<compile_context>
chip_gen: v6e
topology: v6e:2x2x1
jax: 0.10.0
libtpu: 0.0.40
codegen_flags: <defaults>
</compile_context>

<pallas_src>
import jax
import jax.numpy as jnp
from jax.experimental import pallas as pl
from jax.experimental.pallas import tpu as pltpu


def fcnn_kernel(x_ref, w1_ref, b1_ref, w2_ref, b2_ref, w3_ref, b3_ref, out_ref):
    # x tile: (TB, 6) f32 ; w1: (6,128) f32 ; w2: (128,64) bf16 ; w3: (64,26) bf16
    x = x_ref[...]                     # (TB, K1) f32
    w1 = w1_ref[...]                   # (K1, 128) f32
    k1 = x.shape[1]

    # fc1 on the VPU: K=6 contraction as 6 f32 broadcast FMAs (keeps the MXU
    # free for fc2/fc3; f32 FMA path works on v5e which has no bf16 VALU).
    h1 = x[:, 0:1] * w1[0:1, :]
    for k in range(1, k1):             # static 6-iter loop, unrolled at trace
        h1 = h1 + x[:, k:k + 1] * w1[k:k + 1, :]
    h1 = jnp.maximum(h1 + b1_ref[...], 0.0)

    # dropout(p=0.3) -> identity in eval mode
    # TODO(synk): train-mode dropout via pltpu.prng_random_bits if ever needed.

    # fc2 + ReLU on the MXU (bf16 operands, f32 accumulation, f32 bias/ReLU)
    h2 = jnp.dot(h1.astype(jnp.bfloat16), w2_ref[...],
                 preferred_element_type=jnp.float32) + b2_ref[...]
    h2 = jnp.maximum(h2, 0.0)

    # fc3 (logits, no activation)
    out = jnp.dot(h2.astype(jnp.bfloat16), w3_ref[...],
                  preferred_element_type=jnp.float32) + b3_ref[...]
    out_ref[...] = out.astype(out_ref.dtype)


def _round_up(n, m):
    return ((n + m - 1) // m) * m


def fcnn_forward(x, params, block_b=2048, min_tiles=4):
    """x: (B, input_size) f32. params: f32 (w1,b1,w2,b2,w3,b3). Returns f32 logits (B, num_classes)."""
    w1, b1, w2, b2, w3, b3 = params
    B, input_size = x.shape
    num_classes = w3.shape[1]

    # fc2/fc3 MXU operands in bf16 (halves weight DMA, native MXU fast path);
    # fc1 weight stays f32 since fc1 runs on the VPU. Biases stay f32.
    w2b = w2.astype(jnp.bfloat16)
    w3b = w3.astype(jnp.bfloat16)

    # Batch tiling: derive TB from B to minimize pad waste, keep at least
    # `min_tiles` grid steps (so v7x's two TCs each get >= 2 tiles), cap the
    # tile at block_b, and keep TB a multiple of 8 (f32 sublane packing).
    n_tiles = max(pl.cdiv(B, block_b), min(min_tiles, pl.cdiv(B, 8)))
    TB = _round_up(pl.cdiv(B, n_tiles), 8)
    Bp = _round_up(B, TB)
    if Bp != B:
        x = jnp.pad(x, ((0, Bp - B), (0, 0)))

    grid = (Bp // TB,)

    # Lane-padded working-set estimate (x/out blocks pad 6/26 -> 128 lanes,
    # double-buffered, plus f32/bf16 activation temporaries). Only raise the
    # scoped-VMEM limit when a large block_b pushes past v5e's 16 MiB default.
    est_bytes = TB * 128 * 4 * 8
    vmem_limit = int(min(2 * est_bytes, 96 * 1024 * 1024)) if est_bytes > 14 * (1 << 20) else None

    # Constant index_map -> block index never changes -> Pallas skips the
    # re-DMA; weights/biases stay resident in VMEM across all batch tiles.
    full_const = lambda a: pl.BlockSpec(a.shape, lambda i: tuple(0 for _ in a.shape))

    out = pl.pallas_call(
        fcnn_kernel,
        out_shape=jax.ShapeDtypeStruct((Bp, num_classes), jnp.float32),
        grid_spec=pl.GridSpec(
            grid=grid,
            in_specs=[
                pl.BlockSpec((TB, input_size), lambda i: (i, 0)),  # x: streamed per tile
                full_const(w1), full_const(b1),                    # weights: VMEM-resident
                full_const(w2b), full_const(b2),
                full_const(w3b), full_const(b3),
            ],
            out_specs=pl.BlockSpec((TB, num_classes), lambda i: (i, 0)),
        ),
        compiler_params=pltpu.CompilerParams(
            dimension_semantics=("parallel",),  # v7x: shard batch tiles across both TCs
            vmem_limit_bytes=vmem_limit,
        ),
    )(x, w1, b1, w2b, b2, w3b, b3)

    return out[:B] if Bp != B else out


def init_params(key, input_size=6, num_classes=26):
    """Deterministic init mimicking PyTorch nn.Linear default (uniform +/- 1/sqrt(fan_in))."""
    dims = [(input_size, 128), (128, 64), (64, num_classes)]
    params = []
    for (fan_in, fan_out) in dims:
        key, kw, kb = jax.random.split(key, 3)
        bound = 1.0 / jnp.sqrt(fan_in)
        w = jax.random.uniform(kw, (fan_in, fan_out), jnp.float32, -bound, bound)
        b = jax.random.uniform(kb, (1, fan_out), jnp.float32, -bound, bound)
        params.extend([w, b])
    return tuple(params)


def reference_forward(x, params):
    """Pure f32 reference (exact PyTorch-eval math)."""
    w1, b1, w2, b2, w3, b3 = params
    h1 = jnp.maximum(x @ w1 + b1, 0.0)
    h2 = jnp.maximum(h1 @ w2 + b2, 0.0)
    return h2 @ w3 + b3


def reference_forward_mixed(x, params):
    """Reference with the same math as the kernel: fc1 in f32, fc2/fc3 with
    bf16 operands and f32 accumulation."""
    w1, b1, w2, b2, w3, b3 = params
    h1 = jnp.maximum(x @ w1 + b1, 0.0)
    h2 = jnp.maximum(
        jnp.dot(h1.astype(jnp.bfloat16), w2.astype(jnp.bfloat16),
                preferred_element_type=jnp.float32) + b2, 0.0)
    return jnp.dot(h2.astype(jnp.bfloat16), w3.astype(jnp.bfloat16),
                   preferred_element_type=jnp.float32) + b3


if __name__ == "__main__":
    key = jax.random.PRNGKey(0)
    key_x, key_p = jax.random.split(key)

    batch, input_size, num_classes = 32, 6, 26
    x = jax.random.normal(key_x, (batch, input_size), jnp.float32)
    params = init_params(key_p, input_size=input_size, num_classes=num_classes)

    # block_b=16 with min_tiles=4 -> 4 batch tiles of 8 rows: exercises the
    # streamed x/out BlockSpecs, the B-derived tiling and the VMEM-resident
    # weight path while staying at small shapes.
    out = fcnn_forward(x, params, block_b=16)
    out = jax.block_until_ready(out)

    assert out.shape == (batch, num_classes), out.shape

    # Tight check vs a reference using the identical mixed-precision math.
    ref_mixed = reference_forward_mixed(x, params)
    assert jnp.allclose(out, ref_mixed, atol=2e-3, rtol=2e-3), "mismatch vs mixed-precision reference"

    # Loose check vs the pure-f32 PyTorch-equivalent math (only bf16 cast error expected).
    ref_f32 = reference_forward(x, params)
    assert jnp.allclose(out, ref_f32, atol=5e-2, rtol=5e-2), "mismatch vs f32 reference"

    print("KERNEL_OK")
</pallas_src>

<mosaic_0001>
module attributes {stable_mosaic.version = 11 : i64} {
  func.func @fcnn_kernel(%arg0: i32, %arg1: memref<8x6xf32, #tpu.memory_space<vmem>>, %arg2: memref<6x128xf32, #tpu.memory_space<vmem>>, %arg3: memref<1x128xf32, #tpu.memory_space<vmem>>, %arg4: memref<128x64xbf16, #tpu.memory_space<vmem>>, %arg5: memref<1x64xf32, #tpu.memory_space<vmem>>, %arg6: memref<64x26xbf16, #tpu.memory_space<vmem>>, %arg7: memref<1x26xf32, #tpu.memory_space<vmem>>, %arg8: memref<8x26xf32, #tpu.memory_space<vmem>>) attributes {dimension_semantics = [#tpu.dimension_semantics<parallel>], iteration_bounds = array<i64: 4>, scalar_prefetch = 0 : i64, scratch_operands = 0 : i64, tpu.core_type = #tpu.core_type<tc>, window_params = [{transform_indices = @transform_0, window_bounds = array<i64: 8, 6>}, {pipeline_mode = #tpu.pipeline_mode<synchronous>, transform_indices = @transform_1, window_bounds = array<i64: 6, 128>}, {pipeline_mode = #tpu.pipeline_mode<synchronous>, transform_indices = @transform_2, window_bounds = array<i64: 1, 128>}, {pipeline_mode = #tpu.pipeline_mode<synchronous>, transform_indices = @transform_3, window_bounds = array<i64: 128, 64>}, {pipeline_mode = #tpu.pipeline_mode<synchronous>, transform_indices = @transform_4, window_bounds = array<i64: 1, 64>}, {pipeline_mode = #tpu.pipeline_mode<synchronous>, transform_indices = @transform_5, window_bounds = array<i64: 64, 26>}, {pipeline_mode = #tpu.pipeline_mode<synchronous>, transform_indices = @transform_6, window_bounds = array<i64: 1, 26>}, {transform_indices = @transform_7, window_bounds = array<i64: 8, 26>}]} {
    %c0 = arith.constant 0 : index
    %c0_0 = arith.constant 0 : index
    %0 = vector.load %arg1[%c0, %c0_0] : memref<8x6xf32, #tpu.memory_space<vmem>>, vector<8x6xf32>
    %c0_1 = arith.constant 0 : index
    %c0_2 = arith.constant 0 : index
    %1 = vector.load %arg2[%c0_1, %c0_2] : memref<6x128xf32, #tpu.memory_space<vmem>>, vector<6x128xf32>
    %2 = vector.extract_strided_slice %0 {offsets = [0, 0], sizes = [8, 1], strides = [1, 1]} : vector<8x6xf32> to vector<8x1xf32>
    %3 = vector.extract_strided_slice %1 {offsets = [0, 0], sizes = [1, 128], strides = [1, 1]} : vector<6x128xf32> to vector<1x128xf32>
    %4 = vector.broadcast %2 : vector<8x1xf32> to vector<8x128xf32>
    %5 = vector.broadcast %3 : vector<1x128xf32> to vector<8x128xf32>
    %6 = arith.mulf %4, %5 : vector<8x128xf32>
    %7 = vector.extract_strided_slice %0 {offsets = [0, 1], sizes = [8, 1], strides = [1, 1]} : vector<8x6xf32> to vector<8x1xf32>
    %8 = vector.extract_strided_slice %1 {offsets = [1, 0], sizes = [1, 128], strides = [1, 1]} : vector<6x128xf32> to vector<1x128xf32>
    %9 = vector.broadcast %7 : vector<8x1xf32> to vector<8x128xf32>
    %10 = vector.broadcast %8 : vector<1x128xf32> to vector<8x128xf32>
    %11 = arith.mulf %9, %10 : vector<8x128xf32>
    %12 = arith.addf %6, %11 : vector<8x128xf32>
    %13 = vector.extract_strided_slice %0 {offsets = [0, 2], sizes = [8, 1], strides = [1, 1]} : vector<8x6xf32> to vector<8x1xf32>
    %14 = vector.extract_strided_slice %1 {offsets = [2, 0], sizes = [1, 128], strides = [1, 1]} : vector<6x128xf32> to vector<1x128xf32>
    %15 = vector.broadcast %13 : vector<8x1xf32> to vector<8x128xf32>
    %16 = vector.broadcast %14 : vector<1x128xf32> to vector<8x128xf32>
    %17 = arith.mulf %15, %16 : vector<8x128xf32>
    %18 = arith.addf %12, %17 : vector<8x128xf32>
    %19 = vector.extract_strided_slice %0 {offsets = [0, 3], sizes = [8, 1], strides = [1, 1]} : vector<8x6xf32> to vector<8x1xf32>
    %20 = vector.extract_strided_slice %1 {offsets = [3, 0], sizes = [1, 128], strides = [1, 1]} : vector<6x128xf32> to vector<1x128xf32>
    %21 = vector.broadcast %19 : vector<8x1xf32> to vector<8x128xf32>
    %22 = vector.broadcast %20 : vector<1x128xf32> to vector<8x128xf32>
    %23 = arith.mulf %21, %22 : vector<8x128xf32>
    %24 = arith.addf %18, %23 : vector<8x128xf32>
    %25 = vector.extract_strided_slice %0 {offsets = [0, 4], sizes = [8, 1], strides = [1, 1]} : vector<8x6xf32> to vector<8x1xf32>
    %26 = vector.extract_strided_slice %1 {offsets = [4, 0], sizes = [1, 128], strides = [1, 1]} : vector<6x128xf32> to vector<1x128xf32>
    %27 = vector.broadcast %25 : vector<8x1xf32> to vector<8x128xf32>
    %28 = vector.broadcast %26 : vector<1x128xf32> to vector<8x128xf32>
    %29 = arith.mulf %27, %28 : vector<8x128xf32>
    %30 = arith.addf %24, %29 : vector<8x128xf32>
    %31 = vector.extract_strided_slice %0 {offsets = [0, 5], sizes = [8, 1], strides = [1, 1]} : vector<8x6xf32> to vector<8x1xf32>
    %32 = vector.extract_strided_slice %1 {offsets = [5, 0], sizes = [1, 128], strides = [1, 1]} : vector<6x128xf32> to vector<1x128xf32>
    %33 = vector.broadcast %31 : vector<8x1xf32> to vector<8x128xf32>
    %34 = vector.broadcast %32 : vector<1x128xf32> to vector<8x128xf32>
    %35 = arith.mulf %33, %34 : vector<8x128xf32>
    %36 = arith.addf %30, %35 : vector<8x128xf32>
    %c0_3 = arith.constant 0 : index
    %c0_4 = arith.constant 0 : index
    %37 = vector.load %arg3[%c0_3, %c0_4] : memref<1x128xf32, #tpu.memory_space<vmem>>, vector<1x128xf32>
    %38 = vector.broadcast %37 : vector<1x128xf32> to vector<8x128xf32>
    %39 = arith.addf %36, %38 : vector<8x128xf32>
    %cst = arith.constant 0.000000e+00 : f32
    %40 = vector.broadcast %cst : f32 to vector<8x128xf32>
    %41 = arith.maximumf %39, %40 : vector<8x128xf32>
    %42 = arith.truncf %41 : vector<8x128xf32> to vector<8x128xbf16>
    %c0_5 = arith.constant 0 : index
    %c0_6 = arith.constant 0 : index
    %43 = vector.load %arg4[%c0_5, %c0_6] : memref<128x64xbf16, #tpu.memory_space<vmem>>, vector<128x64xbf16>
    %cst_7 = arith.constant dense<0.000000e+00> : vector<8x64xf32>
    %44 = tpu.matmul %42, %43, %cst_7 {dimension_numbers = #tpu.dot_dimension_numbers<[1], [0], [0], [1], [0, 0, 1, 1], [], []>} : vector<8x128xbf16>, vector<128x64xbf16>, vector<8x64xf32> -> vector<8x64xf32>
    %c0_8 = arith.constant 0 : index
    %c0_9 = arith.constant 0 : index
    %45 = vector.load %arg5[%c0_8, %c0_9] : memref<1x64xf32, #tpu.memory_space<vmem>>, vector<1x64xf32>
    %46 = vector.broadcast %45 : vector<1x64xf32> to vector<8x64xf32>
    %47 = arith.addf %44, %46 : vector<8x64xf32>
    %cst_10 = arith.constant 0.000000e+00 : f32
    %48 = vector.broadcast %cst_10 : f32 to vector<8x64xf32>
    %49 = arith.maximumf %47, %48 : vector<8x64xf32>
    %50 = arith.truncf %49 : vector<8x64xf32> to vector<8x64xbf16>
    %c0_11 = arith.constant 0 : index
    %c0_12 = arith.constant 0 : index
    %51 = vector.load %arg6[%c0_11, %c0_12] : memref<64x26xbf16, #tpu.memory_space<vmem>>, vector<64x26xbf16>
    %cst_13 = arith.constant dense<0.000000e+00> : vector<8x26xf32>
    %52 = tpu.matmul %50, %51, %cst_13 {dimension_numbers = #tpu.dot_dimension_numbers<[1], [0], [0], [1], [0, 0, 1, 1], [], []>} : vector<8x64xbf16>, vector<64x26xbf16>, vector<8x26xf32> -> vector<8x26xf32>
    %c0_14 = arith.constant 0 : index
    %c0_15 = arith.constant 0 : index
    %53 = vector.load %arg7[%c0_14, %c0_15] : memref<1x26xf32, #tpu.memory_space<vmem>>, vector<1x26xf32>
    %54 = vector.broadcast %53 : vector<1x26xf32> to vector<8x26xf32>
    %55 = arith.addf %52, %54 : vector<8x26xf32>
    %c0_16 = arith.constant 0 : index
    %c0_17 = arith.constant 0 : index
    %56 = vector.load %arg8[%c0_16, %c0_17] : memref<8x26xf32, #tpu.memory_space<vmem>>, vector<8x26xf32>
    tpu.vector_store %arg8[%c0_16, %c0_17], %55 {strides = array<i32>} : memref<8x26xf32, #tpu.memory_space<vmem>>, vector<8x26xf32>,
    return
  }
  func.func @transform_0(%arg0: i32) -> (i32, i32) {
    %c0_i32 = arith.constant 0 : i32
    %c0_i32_0 = arith.constant 0 : i32
    return %arg0, %c0_i32 : i32, i32
  }
  func.func @transform_1(%arg0: i32) -> (i32, i32) {
    %c0_i32 = arith.constant 0 : i32
    %c0_i32_0 = arith.constant 0 : i32
    %c0_i32_1 = arith.constant 0 : i32
    return %c0_i32, %c0_i32_0 : i32, i32
  }
  func.func @transform_2(%arg0: i32) -> (i32, i32) {
    %c0_i32 = arith.constant 0 : i32
    %c0_i32_0 = arith.constant 0 : i32
    %c0_i32_1 = arith.constant 0 : i32
    return %c0_i32, %c0_i32_0 : i32, i32
  }
  func.func @transform_3(%arg0: i32) -> (i32, i32) {
    %c0_i32 = arith.constant 0 : i32
    %c0_i32_0 = arith.constant 0 : i32
    %c0_i32_1 = arith.constant 0 : i32
    return %c0_i32, %c0_i32_0 : i32, i32
  }
  func.func @transform_4(%arg0: i32) -> (i32, i32) {
    %c0_i32 = arith.constant 0 : i32
    %c0_i32_0 = arith.constant 0 : i32
    %c0_i32_1 = arith.constant 0 : i32
    return %c0_i32, %c0_i32_0 : i32, i32
  }
  func.func @transform_5(%arg0: i32) -> (i32, i32) {
    %c0_i32 = arith.constant 0 : i32
    %c0_i32_0 = arith.constant 0 : i32
    %c0_i32_1 = arith.constant 0 : i32
    return %c0_i32, %c0_i32_0 : i32, i32
  }
  func.func @transform_6(%arg0: i32) -> (i32, i32) {
    %c0_i32 = arith.constant 0 : i32
    %c0_i32_0 = arith.constant 0 : i32
    %c0_i32_1 = arith.constant 0 : i32
    return %c0_i32, %c0_i32_0 : i32, i32
  }
  func.func @transform_7(%arg0: i32) -> (i32, i32) {
    %c0_i32 = arith.constant 0 : i32
    %c0_i32_0 = arith.constant 0 : i32
    return %arg0, %c0_i32 : i32, i32
  }
}

</mosaic_0001>

<llo_original>
// kernel: tpu_custom_call.1
$region0: #{tpu_custom_call.1}
  #allocation0 [shape = 'u32[]', space=smem, size = 0x4, offset = 0x4, fixed_abs, tag = 'smem constant byte address 0x4 - core index']
  #allocation1 [shape = 'u32[144,128]{1,0:T(1,128)}', space=vmem, size = 0x12000, scoped, tag = 'internal scratch']
  %s0 = inlined_call_operand.vmem [shape: f32[32,6], index: 0, kind: input, shape index: {}]
  %s1 = inlined_call_operand.vmem [shape: f32[6,128], index: 1, kind: input, shape index: {}]
  %s2 = inlined_call_operand.vmem [shape: f32[1,128], index: 2, kind: input, shape index: {}]
  %s3 = inlined_call_operand.vmem [shape: bf16[128,64], index: 3, kind: input, shape index: {}]
  %s4 = inlined_call_operand.vmem [shape: f32[1,64], index: 4, kind: input, shape index: {}]
  %s5 = inlined_call_operand.vmem [shape: bf16[64,26], index: 5, kind: input, shape index: {}]
  %s6 = inlined_call_operand.vmem [shape: f32[1,26], index: 6, kind: input, shape index: {}]
  %s7 = inlined_call_operand.hbm [shape: f32[32,26], index: 7, kind: output, shape index: {}]
  %s8 = sld [smem:[#allocation0]]
  $region61: #{tpu_custom_call.1} parent=0
    _
  %s10 = ssub.s32 1, %s8
  %s11 = scalar_select 0, %s10, %s8
  $region1: #{tpu_custom_call.1} parent=0
    #allocation2 [shape = 'u8[8192]{0}', space=vmem, size = 0x2000, scoped, tag = 'output window, operand 0']
    #allocation3 [shape = 's32[2]{0}', space=sflag, size = 0x8, scoped, tag = 'scoped memory for tpu_custom_call.1']
    %12 = vsyncpa [#allocation3], 0
    %s13 = scalar_lea.sflag [#allocation3], 1
    %14 = vsyncpa %s13, 0
    loop: start=0, step=1, limit=6
    $region2: #{tpu_custom_call.1} parent=1 // loop_pre_header
      _
    $region3: #{tpu_custom_call.1} parent=1 // loop_header
      %s16 = sphi 0, %s20
      %p17 = scmp.ge.s32.totalorder %s16, 6
      %s26 = sphi 0, %s28
      %s29 = sphi 0, %s26
      %s30 = sphi 0, %s29
      %s46 = sphi 0, %s30
      %s50 = sphi 0, %s50
      %s52 = sphi 0, %s50
      %s53 = sphi 0, %s52
      %s67 = sphi 0, %s53
      %s71 = sphi 0, %s71
      %s73 = sphi 0, %s71
      %s74 = sphi 0, %s73
      %s88 = sphi 0, %s74
      %s92 = sphi 0, %s92
      %s94 = sphi 0, %s92
      %s95 = sphi 0, %s94
      %s109 = sphi 0, %s95
      %s113 = sphi 0, %s113
      %s115 = sphi 0, %s113
      %s116 = sphi 0, %s115
      %s130 = sphi 0, %s116
      %s134 = sphi 0, %s134
      %s136 = sphi 0, %s134
      %s137 = sphi 0, %s136
      %s151 = sphi 0, %s137
      %s155 = sphi 0, %s155
      %s157 = sphi 0, %s155
      %s158 = sphi 0, %s157
      %s172 = sphi 0, %s158
      %s178 = sphi 0, %s180
      %s181 = sphi 0, %s178
      %s182 = sphi 0, %s181
      %s198 = sphi 0, %s182
    $region4: #{tpu_custom_call.1} parent=1 // loop_header_branch
      %19 = sbr.rel (%p17) target = $region8
    $region5: #{tpu_custom_call.1} parent=1 // loop_body
      %s21 = ssub.s32 %s16, 1
      %s22 = ssub.s32 %s16, 2
      %s23 = sadd.s32 %s16, 1
      %s24 = ssub.s32 %s16, %s23
      %p25 = scmp.eq.s32.totalorder %s24, 0
      %s27 = sadd.s32 %s26, 1
      %s28 = scalar_select %p25, %s26, %s27
      %p31 = pneg %p25
      %p32 = scmp.eq.s32.totalorder %s16, 3
      %p33 = por %p31, %p32
      %p34 = scmp.ne.s32.totalorder %s26, %s29
      %p35 = scmp.eq.s32.totalorder %s16, 0
      %p36 = por %p34, %p35
      %p37 = scmp.ne.s32.totalorder %s26, %s29
      %p38 = scmp.eq.s32.totalorder %s21, 3
      %p39 = por %p37, %p38
      %p40 = scmp.ne.s32.totalorder %s29, %s30
      %p41 = scmp.eq.s32.totalorder %s21, 0
      %p42 = por %p40, %p41
      %p43 = scmp.ne.s32.totalorder %s29, %s30
      %p44 = scmp.eq.s32.totalorder %s22, 3
      %p45 = por %p43, %p44
      %p47 = scmp.ne.s32.totalorder %s30, %s46
      %p48 = scmp.eq.s32.totalorder %s22, 0
      %p49 = por %p47, %p48
      %s51 = sadd.s32 %s50, 1
      %p54 = scmp.eq.s32.totalorder %s16, 3
      %p55 = scmp.ne.s32.totalorder %s50, %s52
      %p56 = scmp.eq.s32.totalorder %s16, 0
      %p57 = por %p55, %p56
      %p58 = scmp.ne.s32.totalorder %s50, %s52
      %p59 = scmp.eq.s32.totalorder %s21, 3
      %p60 = por %p58, %p59
      %p61 = scmp.ne.s32.totalorder %s52, %s53
      %p62 = scmp.eq.s32.totalorder %s21, 0
      %p63 = por %p61, %p62
      %p64 = scmp.ne.s32.totalorder %s52, %s53
      %p65 = scmp.eq.s32.totalorder %s22, 3
      %p66 = por %p64, %p65
      %p68 = scmp.ne.s32.totalorder %s53, %s67
      %p69 = scmp.eq.s32.totalorder %s22, 0
      %p70 = por %p68, %p69
      %s72 = sadd.s32 %s71, 1
      %p75 = scmp.eq.s32.totalorder %s16, 3
      %p76 = scmp.ne.s32.totalorder %s71, %s73
      %p77 = scmp.eq.s32.totalorder %s16, 0
      %p78 = por %p76, %p77
      %p79 = scmp.ne.s32.totalorder %s71, %s73
      %p80 = scmp.eq.s32.totalorder %s21, 3
      %p81 = por %p79, %p80
      %p82 = scmp.ne.s32.totalorder %s73, %s74
      %p83 = scmp.eq.s32.totalorder %s21, 0
      %p84 = por %p82, %p83
      %p85 = scmp.ne.s32.totalorder %s73, %s74
      %p86 = scmp.eq.s32.totalorder %s22, 3
      %p87 = por %p85, %p86
      %p89 = scmp.ne.s32.totalorder %s74, %s88
      %p90 = scmp.eq.s32.totalorder %s22, 0
      %p91 = por %p89, %p90
      %s93 = sadd.s32 %s92, 1
      %p96 = scmp.eq.s32.totalorder %s16, 3
      %p97 = scmp.ne.s32.totalorder %s92, %s94
      %p98 = scmp.eq.s32.totalorder %s16, 0
      %p99 = por %p97, %p98
      %p100 = scmp.ne.s32.totalorder %s92, %s94
      %p101 = scmp.eq.s32.totalorder %s21, 3
      %p102 = por %p100, %p101
      %p103 = scmp.ne.s32.totalorder %s94, %s95
      %p104 = scmp.eq.s32.totalorder %s21, 0
      %p105 = por %p103, %p104
      %p106 = scmp.ne.s32.totalorder %s94, %s95
      %p107 = scmp.eq.s32.totalorder %s22, 3
      %p108 = por %p106, %p107
      %p110 = scmp.ne.s32.totalorder %s95, %s109
      %p111 = scmp.eq.s32.totalorder %s22, 0
      %p112 = por %p110, %p111
      %s114 = sadd.s32 %s113, 1
      %p117 = scmp.eq.s32.totalorder %s16, 3
      %p118 = scmp.ne.s32.totalorder %s113, %s115
      %p119 = scmp.eq.s32.totalorder %s16, 0
      %p120 = por %p118, %p119
      %p121 = scmp.ne.s32.totalorder %s113, %s115
      %p122 = scmp.eq.s32.totalorder %s21, 3
      %p123 = por %p121, %p122
      %p124 = scmp.ne.s32.totalorder %s115, %s116
      %p125 = scmp.eq.s32.totalorder %s21, 0
      %p126 = por %p124, %p125
      %p127 = scmp.ne.s32.totalorder %s115, %s116
      %p128 = scmp.eq.s32.totalorder %s22, 3
      %p129 = por %p127, %p128
      %p131 = scmp.ne.s32.totalorder %s116, %s130
      %p132 = scmp.eq.s32.totalorder %s22, 0
      %p133 = por %p131, %p132
      %s135 = sadd.s32 %s134, 1
      %p138 = scmp.eq.s32.totalorder %s16, 3
      %p139 = scmp.ne.s32.totalorder %s134, %s136
      %p140 = scmp.eq.s32.totalorder %s16, 0
      %p141 = por %p139, %p140
      %p142 = scmp.ne.s32.totalorder %s134, %s136
      %p143 = scmp.eq.s32.totalorder %s21, 3
      %p144 = por %p142, %p143
      %p145 = scmp.ne.s32.totalorder %s136, %s137
      %p146 = scmp.eq.s32.totalorder %s21, 0
      %p147 = por %p145, %p146
      %p148 = scmp.ne.s32.totalorder %s136, %s137
      %p149 = scmp.eq.s32.totalorder %s22, 3
      %p150 = por %p148, %p149
      %p152 = scmp.ne.s32.totalorder %s137, %s151
      %p153 = scmp.eq.s32.totalorder %s22, 0
      %p154 = por %p152, %p153
      %s156 = sadd.s32 %s155, 1
      %p159 = scmp.eq.s32.totalorder %s16, 3
      %p160 = scmp.ne.s32.totalorder %s155, %s157
      %p161 = scmp.eq.s32.totalorder %s16, 0
      %p162 = por %p160, %p161
      %p163 = scmp.ne.s32.totalorder %s155, %s157
      %p164 = scmp.eq.s32.totalorder %s21, 3
      %p165 = por %p163, %p164
      %p166 = scmp.ne.s32.totalorder %s157, %s158
      %p167 = scmp.eq.s32.totalorder %s21, 0
      %p168 = por %p166, %p167
      %p169 = scmp.ne.s32.totalorder %s157, %s158
      %p170 = scmp.eq.s32.totalorder %s22, 3
      %p171 = por %p169, %p170
      %p173 = scmp.ne.s32.totalorder %s158, %s172
      %p174 = scmp.eq.s32.totalorder %s22, 0
      %p175 = por %p173, %p174
      %s176 = ssub.s32 %s16, %s23
      %p177 = scmp.eq.s32.totalorder %s176, 0
      %s179 = sadd.s32 %s178, 1
      %s180 = scalar_select %p177, %s178, %s179
      %p183 = pneg %p177
      %p184 = scmp.eq.s32.totalorder %s16, 3
      %p185 = por %p183, %p184
      %p186 = scmp.ne.s32.totalorder %s178, %s181
      %p187 = scmp.eq.s32.totalorder %s16, 0
      %p188 = por %p186, %p187
      %p189 = scmp.ne.s32.totalorder %s178, %s181
      %p190 = scmp.eq.s32.totalorder %s21, 3
      %p191 = por %p189, %p190
      %p192 = scmp.ne.s32.totalorder %s181, %s182
      %p193 = scmp.eq.s32.totalorder %s21, 0
      %p194 = por %p192, %p193
      %p195 = scmp.ne.s32.totalorder %s181, %s182
      %p196 = scmp.eq.s32.totalorder %s22, 3
      %p197 = por %p195, %p196
      %p199 = scmp.ne.s32.totalorder %s182, %s198
      %p200 = scmp.eq.s32.totalorder %s22, 0
      %p201 = por %p199, %p200
      %p202 = scmp.le.s32.totalorder 1, %s16
      %p203 = scmp.lt.s32.totalorder %s16, 5
      %p204 = pnand %p202, %p203
      %p205 = pneg %p204
      // Predicated region
      $region9: #{tpu_custom_call.1} parent=5 // pred_check
        _
      $region10: #{tpu_custom_call.1} parent=5 // pred_check_branch
        %207 = sbr.rel (%p204) target = $region12
      $region11: #{tpu_custom_call.1} parent=5 // pred_region
        %s208 = ssub.s32 %s16, 1
        // Predicated region
        $region13: #{tpu_custom_call.1} parent=11 // pred_check
          %p209 = pneg %p63
        $region14: #{tpu_custom_call.1} parent=11 // pred_check_branch
          %211 = sbr.rel (%p209) target = $region16
        $region15: #{tpu_custom_call.1} parent=11 // pred_region
          _
        $region16: #{tpu_custom_call.1} parent=11 // pred_fallthru
          _
        // Predicated region
        $region17: #{tpu_custom_call.1} parent=11 // pred_check
          %p212 = pneg %p84
        $region18: #{tpu_custom_call.1} parent=11 // pred_check_branch
          %214 = sbr.rel (%p212) target = $region20
        $region19: #{tpu_custom_call.1} parent=11 // pred_region
          _
        $region20: #{tpu_custom_call.1} parent=11 // pred_fallthru
          _
        // Predicated region
        $region21: #{tpu_custom_call.1} parent=11 // pred_check
          %p215 = pneg %p105
        $region22: #{tpu_custom_call.1} parent=11 // pred_check_branch
          %217 = sbr.rel (%p215) target = $region24
        $region23: #{tpu_custom_call.1} parent=11 // pred_region
          _
        $region24: #{tpu_custom_call.1} parent=11 // pred_fallthru
          _
        // Predicated region
        $region25: #{tpu_custom_call.1} parent=11 // pred_check
          %p218 = pneg %p126
        $region26: #{tpu_custom_call.1} parent=11 // pred_check_branch
          %220 = sbr.rel (%p218) target = $region28
        $region27: #{tpu_custom_call.1} parent=11 // pred_region
          _
        $region28: #{tpu_custom_call.1} parent=11 // pred_fallthru
          _
        // Predicated region
        $region29: #{tpu_custom_call.1} parent=11 // pred_check
          %p221 = pneg %p147
        $region30: #{tpu_custom_call.1} parent=11 // pred_check_branch
          %223 = sbr.rel (%p221) target = $region32
        $region31: #{tpu_custom_call.1} parent=11 // pred_region
          _
        $region32: #{tpu_custom_call.1} parent=11 // pred_fallthru
          _
        // Predicated region
        $region33: #{tpu_custom_call.1} parent=11 // pred_check
          %p224 = pneg %p168
        $region34: #{tpu_custom_call.1} parent=11 // pred_check_branch
          %226 = sbr.rel (%p224) target = $region36
        $region35: #{tpu_custom_call.1} parent=11 // pred_region
          _
        $region36: #{tpu_custom_call.1} parent=11 // pred_fallthru
          _
      $region12: #{tpu_custom_call.1} parent=5 // pred_fallthru
        _
      %p227 = scmp.lt.s32.totalorder %s16, 4
      // Predicated region
      $region37: #{tpu_custom_call.1} parent=5 // pred_check
        %p228 = pneg %p227
      $region38: #{tpu_custom_call.1} parent=5 // pred_check_branch
        %230 = sbr.rel (%p228) target = $region40
      $region39: #{tpu_custom_call.1} parent=5 // pred_region
        // Predicated region
        $region41: #{tpu_custom_call.1} parent=39 // pred_check
          %p231 = pneg %p36
        $region42: #{tpu_custom_call.1} parent=39 // pred_check_branch
          %233 = sbr.rel (%p231) target = $region44
        $region43: #{tpu_custom_call.1} parent=39 // pred_region
          %p234 = scmp.lt.s32.totalorder %s16, 3
          %s235 = scalar_select %p234, %s16, 3
          %s236 = smul.addr %s235, 8
          %s237 = scalar_lea.vmem %s0, %s236
        $region44: #{tpu_custom_call.1} parent=39 // pred_fallthru
          _
      $region40: #{tpu_custom_call.1} parent=5 // pred_fallthru
        _
      %p238 = scmp.le.s32.totalorder 1, %s16
      %p239 = scmp.lt.s32.totalorder %s16, 5
      %p240 = pnand %p238, %p239
      %p241 = pneg %p240
      // Predicated region
      $region45: #{tpu_custom_call.1} parent=5 // pred_check
        _
      $region46: #{tpu_custom_call.1} parent=5 // pred_check_branch
        %243 = sbr.rel (%p240) target = $region48
      $region47: #{tpu_custom_call.1} parent=5 // pred_region
        %s244 = ssub.s32 %s16, 1
        %p245 = scmp.lt.s32.totalorder %s21, 3
        %s246 = scalar_select %p245, %s21, 3
        %s247 = smul.addr %s246, 8
        %s248 = scalar_lea.vmem %s0, %s247
        %p249 = pneg %p42
        %p250 = pneg %p39
        %p251 = pneg %p63
        %p252 = pneg %p60
        %p253 = pneg %p84
        %p254 = pneg %p81
        %p255 = pneg %p105
        %p256 = pneg %p102
        %p257 = pneg %p126
        %p258 = pneg %p123
        %p259 = pneg %p147
        %p260 = pneg %p144
        %p261 = pneg %p168
        %p262 = pneg %p165
        %p263 = pneg %p194
        %p264 = pneg %p191
        %s265 = sand.u32 %s181, 1
        %s266 = scalar_lea.sflag [#allocation3], %s265
        %s267 = sand.u32 %s181, 1
        %s268 = smul.addr %s267, 8
        %s269 = scalar_lea.vmem [#allocation2], %s268
        %p270 = scmp.lt.s32.totalorder %s21, 3
        %s271 = scalar_select %p270, %s21, 3
        %s272 = smul.addr %s271, 8
        %s273 = scalar_lea.vmem %s0, %s272
        %v275 = vld [vmem:[%s273] sm:$0xff]
        %v276 = vld [vmem:[%s1] sm:$0x3f]
        %278 = vset.pattern.permute.xlu0 0
        %279 = vperm.xlu0 %278, %v275
        %v280 = vpop.permute.xlu0 %279
        %v282 = vlaneseq
        %v283 = vshrl.u32 %v282, 7
        %v284 = vsub.s32 0, %v283
        %v285 = vrot.slane %v276, %v284
        %v286 = vmul.f32 %v280, %v285
        %287 = vset.pattern.permute.xlu0 1
        %288 = vperm.xlu0 %287, %v275
        %v289 = vpop.permute.xlu0 %288
        %v291 = vlaneseq
        %v292 = vshrl.u32 %v291, 7
        %v293 = vsub.s32 1, %v292
        %v294 = vrot.slane %v276, %v293
        %v295 = vmul.f32 %v289, %v294
        %v296 = vadd.f32 %v286, %v295
        %297 = vset.pattern.permute.xlu0 2
        %298 = vperm.xlu0 %297, %v275
        %v299 = vpop.permute.xlu0 %298
        %v301 = vlaneseq
        %v302 = vshrl.u32 %v301, 7
        %v303 = vsub.s32 2, %v302
        %v304 = vrot.slane %v276, %v303
        %v305 = vmul.f32 %v299, %v304
        %v306 = vadd.f32 %v296, %v305
        %307 = vset.pattern.permute.xlu0 3
        %308 = vperm.xlu0 %307, %v275
        %v309 = vpop.permute.xlu0 %308
        %v311 = vlaneseq
        %v312 = vshrl.u32 %v311, 7
        %v313 = vsub.s32 3, %v312
        %v314 = vrot.slane %v276, %v313
        %v315 = vmul.f32 %v309, %v314
        %v316 = vadd.f32 %v306, %v315
        %317 = vset.pattern.permute.xlu0 4
        %318 = vperm.xlu0 %317, %v275
        %v319 = vpop.permute.xlu0 %318
        %v321 = vlaneseq
        %v322 = vshrl.u32 %v321, 7
        %v323 = vsub.s32 4, %v322
        %v324 = vrot.slane %v276, %v323
        %v325 = vmul.f32 %v319, %v324
        %v326 = vadd.f32 %v316, %v325
        %327 = vset.pattern.permute.xlu0 5
        %328 = vperm.xlu0 %327, %v275
        %v329 = vpop.permute.xlu0 %328
        %v331 = vlaneseq
        %v332 = vshrl.u32 %v331, 7
        %v333 = vsub.s32 5, %v332
        %v334 = vrot.slane %v276, %v333
        %v335 = vmul.f32 %v329, %v334
        %v336 = vadd.f32 %v326, %v335
        %v337 = vld [vmem:[%s2] sm:$0x1]
        %v339 = vlaneseq
        %v340 = vshrl.u32 %v339, 7
        %v341 = vsub.s32 0, %v340
        %v342 = vrot.slane %v337, %v341
        %v344 = vadd.f32 %v336, %v342
        %v345 = vmax.f32 %v344, 0.0
        %v346 = vpack.c.bf16 %v345, %v345
        %v347 = vld [vmem:[%s3] sm:$0xf]
        %v348 = vld [vmem:[%s3 + $0x4] sm:$0xf]
        %v349 = vld [vmem:[%s3 + $0x8] sm:$0xf]
        %v350 = vld [vmem:[%s3 + $0xc] sm:$0xf]
        %v351 = vld [vmem:[%s3 + $0x10] sm:$0xf]
        %v352 = vld [vmem:[%s3 + $0x14] sm:$0xf]
        %v353 = vld [vmem:[%s3 + $0x18] sm:$0xf]
        %v354 = vld [vmem:[%s3 + $0x1c] sm:$0xf]
        %v355 = vld [vmem:[%s3 + $0x20] sm:$0xf]
        %v356 = vld [vmem:[%s3 + $0x24] sm:$0xf]
        %v357 = vld [vmem:[%s3 + $0x28] sm:$0xf]
        %v358 = vld [vmem:[%s3 + $0x2c] sm:$0xf]
        %v359 = vld [vmem:[%s3 + $0x30] sm:$0xf]
        %v360 = vld [vmem:[%s3 + $0x34] sm:$0xf]
        %v361 = vld [vmem:[%s3 + $0x38] sm:$0xf]
        %v362 = vld [vmem:[%s3 + $0x3c] sm:$0xf]
        %v363 = vld [vmem:[%s4] sm:$0x1]
        %v365 = vlaneseq
        %v366 = vshrl.u32 %v365, 7
        %v367 = vsub.s32 0, %v366
        %v368 = vrot.slane %v363, %v367
        %v386 = vunpack.c.l.b16 %v347
        %v387 = vunpack.c.l.b16 %v348
        %v388 = vunpack.c.l.b16 %v349
        %v389 = vunpack.c.l.b16 %v350
        %v390 = vunpack.c.l.b16 %v351
        %v391 = vunpack.c.l.b16 %v352
        %v392 = vunpack.c.l.b16 %v353
        %v393 = vunpack.c.l.b16 %v354
        %v394 = vunpack.c.l.b16 %v355
        %v395 = vunpack.c.l.b16 %v356
        %v396 = vunpack.c.l.b16 %v357
        %v397 = vunpack.c.l.b16 %v358
        %v398 = vunpack.c.l.b16 %v359
        %v399 = vunpack.c.l.b16 %v360
        %v400 = vunpack.c.l.b16 %v361
        %v401 = vunpack.c.l.b16 %v362
        %v402 = vpack.c.b16 %v387, %v386
        %v403 = vpack.c.b16 %v389, %v388
        %v404 = vpack.c.b16 %v391, %v390
        %v405 = vpack.c.b16 %v393, %v392
        %v406 = vpack.c.b16 %v395, %v394
        %v407 = vpack.c.b16 %v397, %v396
        %v408 = vpack.c.b16 %v399, %v398
        %v409 = vpack.c.b16 %v401, %v400
        %418 = vmatprep.subr.bf16.mxu0 0
        %419 = vmatpush1.bf16.msra.mxu0 %v409
        %420 = vmatprep.subr.bf16.mxu0 0
        %421 = vmatpush1.bf16.msra.mxu0 %v408
        %422 = vmatprep.subr.bf16.mxu0 0
        %423 = vmatpush1.bf16.msra.mxu0 %v407
        %424 = vmatprep.subr.bf16.mxu0 0
        %425 = vmatpush1.bf16.msra.mxu0 %v406
        %426 = vmatprep.subr.bf16.mxu0 0
        %427 = vmatpush1.bf16.msra.mxu0 %v405
        %428 = vmatprep.subr.bf16.mxu0 0
        %429 = vmatpush1.bf16.msra.mxu0 %v404
        %430 = vmatprep.subr.bf16.mxu0 0
        %431 = vmatpush1.bf16.msra.mxu0 %v403
        %432 = vmatprep.subr.bf16.mxu0 0
        %433 = vmatpush1.bf16.msra.mxu0 %v402
        %434 = vmatprep.subr.bf16.mxu0 0
        %435 = vmatpush2.bf16.msra.mxu0 0
        %436 = vmatprep.subr.bf16.mxu0 0
        %437 = vmatpush2.bf16.msra.mxu0 0
        %438 = vmatprep.subr.bf16.mxu0 0
        %439 = vmatpush2.bf16.msra.mxu0 0
        %440 = vmatprep.subr.bf16.mxu0 0
        %441 = vmatpush2.bf16.msra.mxu0 0
        %442 = vmatprep.subr.bf16.mxu0 0
        %443 = vmatpush2.bf16.msra.mxu0 0
        %444 = vmatprep.subr.bf16.mxu0 0
        %445 = vmatpush2.bf16.msra.mxu0 0
        %446 = vmatprep.subr.bf16.mxu0 0
        %447 = vmatpush2.bf16.msra.mxu0 0
        %448 = vmatprep.subr.bf16.mxu0 0
        %449 = vmatpush2.bf16.msra.mxu0 0
        %450 = vmatprep.mubr.bf16.mxu0 0
        %451 = vmatmul.mubr.bf16.gmra.mxu0 %v346
        %v452 = vpop.f32.mrf.mxu0
        %v453 = vadd.f32 %v368, %v452
        %v454 = vpop.f32.mrf.mxu0
        %v455 = vpop.f32.mrf.mxu0
        %v456 = vpop.f32.mrf.mxu0
        %457 = vdwg.mxu0
        %v458 = vmax.f32 %v453, 0.0
        %v459 = vpack.c.bf16 %v458, %v458
        %v460 = vld [vmem:[%s5] sm:$0xf]
        %v461 = vld [vmem:[%s5 + $0x4] sm:$0xf]
        %v462 = vld [vmem:[%s5 + $0x8] sm:$0xf]
        %v463 = vld [vmem:[%s5 + $0xc] sm:$0xf]
        %v464 = vld [vmem:[%s5 + $0x10] sm:$0xf]
        %v465 = vld [vmem:[%s5 + $0x14] sm:$0xf]
        %v466 = vld [vmem:[%s5 + $0x18] sm:$0xf]
        %v467 = vld [vmem:[%s5 + $0x1c] sm:$0xf]
        %v468 = vld [vmem:[%s6] sm:$0x1]
        %v470 = vlaneseq
        %v471 = vshrl.u32 %v470, 7
        %v472 = vsub.s32 0, %v471
        %v473 = vrot.slane %v468, %v472
        %v483 = vunpack.c.l.b16 %v460
        %v484 = vunpack.c.l.b16 %v461
        %v485 = vunpack.c.l.b16 %v462
        %v486 = vunpack.c.l.b16 %v463
        %v487 = vunpack.c.l.b16 %v464
        %v488 = vunpack.c.l.b16 %v465
        %v489 = vunpack.c.l.b16 %v466
        %v490 = vunpack.c.l.b16 %v467
        %v491 = vpack.c.b16 %v484, %v483
        %v492 = vpack.c.b16 %v486, %v485
        %v493 = vpack.c.b16 %v488, %v487
        %v494 = vpack.c.b16 %v490, %v489
        %vm499 = vcmask 523264
        %v501 = vsel %vm499, %v459, 0
        %503 = vmatprep.subr.bf16.mxu0 0
        %504 = vmatpush1.bf16.msra.mxu0 0
        %505 = vmatprep.subr.bf16.mxu0 0
        %506 = vmatpush1.bf16.msra.mxu0 0
        %507 = vmatprep.subr.bf16.mxu0 0
        %508 = vmatpush1.bf16.msra.mxu0 0
        %509 = vmatprep.subr.bf16.mxu0 0
        %510 = vmatpush1.bf16.msra.mxu0 0
        %511 = vmatprep.subr.bf16.mxu0 0
        %512 = vmatpush1.bf16.msra.mxu0 %v494
        %513 = vmatprep.subr.bf16.mxu0 0
        %514 = vmatpush1.bf16.msra.mxu0 %v493
        %515 = vmatprep.subr.bf16.mxu0 0
        %516 = vmatpush1.bf16.msra.mxu0 %v492
        %517 = vmatprep.subr.bf16.mxu0 0
        %518 = vmatpush1.bf16.msra.mxu0 %v491
        %519 = vmatprep.subr.bf16.mxu0 0
        %520 = vmatpush2.bf16.msra.mxu0 0
        %521 = vmatprep.subr.bf16.mxu0 0
        %522 = vmatpush2.bf16.msra.mxu0 0
        %523 = vmatprep.subr.bf16.mxu0 0
        %524 = vmatpush2.bf16.msra.mxu0 0
        %525 = vmatprep.subr.bf16.mxu0 0
        %526 = vmatpush2.bf16.msra.mxu0 0
        %527 = vmatprep.subr.bf16.mxu0 0
        %528 = vmatpush2.bf16.msra.mxu0 0
        %529 = vmatprep.subr.bf16.mxu0 0
        %530 = vmatpush2.bf16.msra.mxu0 0
        %531 = vmatprep.subr.bf16.mxu0 0
        %532 = vmatpush2.bf16.msra.mxu0 0
        %533 = vmatprep.subr.bf16.mxu0 0
        %534 = vmatpush2.bf16.msra.mxu0 0
        %535 = vmatprep.mubr.bf16.mxu0 0
        %536 = vmatmul.mubr.bf16.gmra.mxu0 %v501
        %v537 = vpop.f32.mrf.mxu0
        %v538 = vadd.f32 %v473, %v537
        %v539 = vpop.f32.mrf.mxu0
        %v540 = vpop.f32.mrf.mxu0
        %v541 = vpop.f32.mrf.mxu0
        %542 = vdwg.mxu0
        %vm543 = vcmask 211968
        %544 = vst.msk [vmem:[%s269] sm:$0xff] %vm543, %v538
        %s545 = sand.u32 %s181, 1
        %s546 = scalar_lea.sflag [#allocation3], %s545
        %s547 = sand.u32 %s181, 1
        %s548 = smul.addr %s547, 8
        %s549 = scalar_lea.vmem [#allocation2], %s548
        // Predicated region
        $region49: #{tpu_custom_call.1} parent=47 // pred_check
          %p550 = pneg %p191
        $region50: #{tpu_custom_call.1} parent=47 // pred_check_branch
          %552 = sbr.rel (%p550) target = $region52
        $region51: #{tpu_custom_call.1} parent=47 // pred_region
          %s554 = ssub.s32 128, 128
          %555 = vsyncadd %s546, %s554
          %s556 = smul.addr %s21, 128
          %s557 = scalar_lea.hbm %s7, %s556
          %s559 = sshll.u32 %s549, 4
          %s560 = int_to_ptr.vmem [resolvable:$true] %s559
          %562 = dma.vmem_to_hbm [thread:$0]  %s560, 128, %s557, %s546
        $region52: #{tpu_custom_call.1} parent=47 // pred_fallthru
          _
      $region48: #{tpu_custom_call.1} parent=5 // pred_fallthru
        _
      %p563 = scmp.le.s32.totalorder 2, %s16
      // Predicated region
      $region53: #{tpu_custom_call.1} parent=5 // pred_check
        %p564 = pneg %p563
      $region54: #{tpu_custom_call.1} parent=5 // pred_check_branch
        %566 = sbr.rel (%p564) target = $region56
      $region55: #{tpu_custom_call.1} parent=5 // pred_region
        %s567 = ssub.s32 %s16, 2
        // Predicated region
        $region57: #{tpu_custom_call.1} parent=55 // pred_check
          %p568 = pneg %p197
        $region58: #{tpu_custom_call.1} parent=55 // pred_check_branch
          %570 = sbr.rel (%p568) target = $region60
        $region59: #{tpu_custom_call.1} parent=55 // pred_region
          %s571 = sand.u32 %s182, 1
          %s572 = scalar_lea.sflag [#allocation3], %s571
          %s573 = sand.u32 %s182, 1
          %s574 = smul.addr %s573, 8
          %s575 = scalar_lea.vmem [#allocation2], %s574
          %576 = dma.done %s572, 128
        $region60: #{tpu_custom_call.1} parent=55 // pred_fallthru
          _
      $region56: #{tpu_custom_call.1} parent=5 // pred_fallthru
        _
    $region6: #{tpu_custom_call.1} parent=1 // loop_footer
      %s20 = sadd.s32 1, %s16
    $region7: #{tpu_custom_call.1} parent=1 // loop_footer_branch
      %15 = sbr.rel target = $region3
    $region8: #{tpu_custom_call.1} parent=1 // loop_exit
      _
    %577 = vsyncpa [#allocation3], 1
    %s578 = scalar_lea.sflag [#allocation3], 1
    %579 = vsyncpa %s578, 1

</llo_original>
